<compile_context>
chip_gen: v7x
topology: tpu7x:2x2x1
jax: 0.10.0
libtpu: 0.0.40
codegen_flags: <defaults>
</compile_context>

<pallas_src>
import jax
import jax.numpy as jnp
from jax import lax
from jax.experimental import pallas as pl
from jax.experimental.pallas import tpu as pltpu

_LANE = 128
_SUB = 8


def _round_up(x, m):
    return ((x + m - 1) // m) * m


def _tpu_defaults():
    """(num tensorcores per chip, default max rows per tile) for local TPU."""
    try:
        kind = jax.devices()[0].device_kind.lower()
    except Exception:
        return 1, 2048
    if "v7" in kind:      # v7x: 2 TensorCores/chip, ~3.2 TB/s HBM per TC
        return 2, 4096
    return 1, 2048        # v5e / v6e: 1 TensorCore/chip


def kl_loss_normal(q_loc, q_scale, p_loc, p_scale, *,
                   max_rows_per_tile=None, num_cores=None):
    """mean(KL(Normal(q_loc, q_scale) || Normal(p_loc, p_scale))) via Pallas."""
    assert q_loc.shape == q_scale.shape == p_loc.shape == p_scale.shape
    n = q_loc.size
    itemsize = jnp.dtype(q_loc.dtype).itemsize

    auto_cores, auto_rows = _tpu_defaults()
    if num_cores is None:
        num_cores = auto_cores
    if max_rows_per_tile is None:
        max_rows_per_tile = auto_rows

    # Sublane alignment of the packed dtype: 8 (32-bit), 16 (16-bit), 32 (8-bit).
    sub_align = max(_SUB, _SUB * (4 // max(itemsize, 1)))
    max_rows_per_tile = _round_up(max_rows_per_tile, sub_align)

    rows = pl.cdiv(n, _LANE)
    if rows <= max_rows_per_tile:
        # Single tile: round rows up to the sublane tile (tiny pad, tiny input).
        rows_pad = _round_up(rows, sub_align)
        rows_per_tile = rows_pad
    else:
        rows_pad = rows
        rows_per_tile = max_rows_per_tile

    padded_n = rows_pad * _LANE

    ql = jnp.ravel(q_loc)
    qs = jnp.ravel(q_scale)
    pl_ = jnp.ravel(p_loc)
    ps = jnp.ravel(p_scale)
    if padded_n != n:
        # Only triggers when n % 128 != 0 (the lane-dense reshape needs it) or
        # for tiny single-tile inputs.  The padded region is excluded by the
        # in-kernel mask; scales are padded with 1 just to keep pads finite.
        # TODO(synk): a non-multiple-of-128 element count on a *large* tensor
        # still costs one pad copy here; such shapes are rare for KL losses.
        pad = padded_n - n
        ql = jnp.pad(ql, (0, pad))
        qs = jnp.pad(qs, (0, pad), constant_values=1)
        pl_ = jnp.pad(pl_, (0, pad))
        ps = jnp.pad(ps, (0, pad), constant_values=1)

    ql2 = ql.reshape(rows_pad, _LANE)
    qs2 = qs.reshape(rows_pad, _LANE)
    pl2 = pl_.reshape(rows_pad, _LANE)
    ps2 = ps.reshape(rows_pad, _LANE)

    num_tiles = pl.cdiv(rows_pad, rows_per_tile)
    n_cores = max(1, min(num_cores, num_tiles))
    steps = pl.cdiv(num_tiles, n_cores)

    # Grid may over-cover n: ragged last tile (rows_pad % rows_per_tile != 0 or
    # lane padding) and/or clamped duplicate tiles when num_tiles % n_cores != 0.
    needs_mask = (num_tiles * rows_per_tile * _LANE != n) or (n_cores * steps != num_tiles)

    def kernel(q_loc_ref, q_scale_ref, p_loc_ref, p_scale_ref, o_ref, acc_ref):
        c = pl.program_id(0)
        i = pl.program_id(1)
        t = c * steps + i          # global row-tile index

        @pl.when(i == 0)
        def _():
            acc_ref[...] = jnp.zeros_like(acc_ref)

        mu_q = q_loc_ref[...].astype(jnp.float32)
        sd_q = q_scale_ref[...].astype(jnp.float32)
        mu_p = p_loc_ref[...].astype(jnp.float32)
        sd_p = p_scale_ref[...].astype(jnp.float32)

        inv_sp = 1.0 / sd_p          # exact divide: keeps the 1e-5 tolerance
        ratio = sd_q * inv_sp
        dmu = (mu_q - mu_p) * inv_sp
        # Accumulate ratio^2 + dmu^2 - 2*log(ratio); the *0.5 and the constant
        # "-1 per element" are folded into the wrapper epilogue.
        val = ratio * ratio + dmu * dmu - 2.0 * jnp.log(ratio)

        def vreg_sum(x):
            # (rows_per_tile,128) -> (8,128): layout-preserving reshape, VPU adds.
            return x.reshape(-1, _SUB, _LANE).sum(axis=0)

        if needs_mask:
            @pl.when(t >= num_tiles - 1)        # last (ragged) / clamped tiles
            def _():
                row = lax.broadcasted_iota(jnp.int32, val.shape, 0)
                lane = lax.broadcasted_iota(jnp.int32, val.shape, 1)
                gidx = (t * rows_per_tile + row) * _LANE + lane
                acc_ref[...] += vreg_sum(jnp.where(gidx < n, val, 0.0))

            @pl.when(t < num_tiles - 1)         # interior tiles: no mask cost
            def _():
                acc_ref[...] += vreg_sum(val)
        else:
            acc_ref[...] += vreg_sum(val)

        @pl.when(i == pl.num_programs(1) - 1)
        def _():
            o_ref[...] = acc_ref[...]

    if n_cores * steps == num_tiles:
        def in_index(c, i):
            return (c * steps + i, 0)
    else:
        def in_index(c, i):                      # clamp; duplicate tile is masked
            return (jnp.minimum(c * steps + i, num_tiles - 1), 0)

    if n_cores > 1:
        dim_sem = (getattr(pltpu, "CORE_PARALLEL", "parallel"),
                   getattr(pltpu, "ARBITRARY", "arbitrary"))
    else:
        dim_sem = ("arbitrary", "arbitrary")

    block_bytes = rows_per_tile * _LANE * itemsize
    vmem_limit = int(4 * 2 * block_bytes * 1.25) + (1 << 20)
    vmem_limit = min(max(vmem_limit, 16 * 1024 * 1024), 64 * 1024 * 1024)

    out = pl.pallas_call(
        kernel,
        out_shape=jax.ShapeDtypeStruct((n_cores * _SUB, _LANE), jnp.float32),
        grid_spec=pltpu.PrefetchScalarGridSpec(
            num_scalar_prefetch=0,
            grid=(n_cores, steps),
            in_specs=[pl.BlockSpec((rows_per_tile, _LANE), in_index)
                      for _ in range(4)],
            out_specs=pl.BlockSpec((_SUB, _LANE), lambda c, i: (c, 0)),
            scratch_shapes=[pltpu.VMEM((_SUB, _LANE), jnp.float32)],
        ),
        compiler_params=pltpu.CompilerParams(
            dimension_semantics=dim_sem,
            vmem_limit_bytes=vmem_limit,
        ),
    )(ql2, qs2, pl2, ps2)

    total = jnp.sum(out, dtype=jnp.float32)
    # sum(val) = sum(r^2 + d^2 - 2*log r)  =>  mean KL = 0.5*(sum(val)/n - 1)
    return 0.5 * (total / n - 1.0)


# TODO(synk): torch.distributions.kl_divergence dispatches over arbitrary
# distribution pairs; only the Normal||Normal (diagonal Gaussian) case — the
# one KLLoss is used with in practice — is implemented here.


if __name__ == "__main__":
    key = jax.random.PRNGKey(0)
    k1, k2, k3, k4 = jax.random.split(key, 4)

    def make(shape, dtype=jnp.float32):
        q_loc = jax.random.normal(k1, shape, dtype=dtype)
        q_scale = jax.random.uniform(k2, shape, dtype=dtype, minval=0.5, maxval=1.5)
        p_loc = jax.random.normal(k3, shape, dtype=dtype)
        p_scale = jax.random.uniform(k4, shape, dtype=dtype, minval=0.5, maxval=1.5)
        return q_loc, q_scale, p_loc, p_scale

    def ref_kl_mean(q_loc, q_scale, p_loc, p_scale):
        ratio = (q_scale / p_scale).astype(jnp.float32)
        dmu = ((q_loc - p_loc) / p_scale).astype(jnp.float32)
        return jnp.mean(0.5 * (ratio * ratio + dmu * dmu - 1.0) - jnp.log(ratio))

    # 1) Main shape (B=2, C=4, H=16, W=16): lane-aligned, single tile, no pad/mask.
    args = make((2, 4, 16, 16))
    loss = jax.block_until_ready(kl_loss_normal(*args))
    ref = ref_kl_mean(*args)
    assert jnp.allclose(loss, ref, rtol=1e-5, atol=1e-5), (loss, ref)

    # 2) Multi-tile accumulation path (force small tiles).
    loss2 = jax.block_until_ready(kl_loss_normal(*args, max_rows_per_tile=8))
    assert jnp.allclose(loss2, ref, rtol=1e-5, atol=1e-5), (loss2, ref)

    # 3) Ragged element count (3*5*7 = 105): exercises the in-kernel tail mask.
    args_r = make((3, 5, 7))
    loss_r = jax.block_until_ready(kl_loss_normal(*args_r))
    ref_r = ref_kl_mean(*args_r)
    assert jnp.allclose(loss_r, ref_r, rtol=1e-5, atol=1e-5), (loss_r, ref_r)

    print("KERNEL_OK")
</pallas_src>

<mosaic_0001>
module attributes {stable_mosaic.version = 11 : i64} {
  func.func @kernel(%arg0: i32, %arg1: i32, %arg2: memref<16x128xf32, #tpu.memory_space<vmem>>, %arg3: memref<16x128xf32, #tpu.memory_space<vmem>>, %arg4: memref<16x128xf32, #tpu.memory_space<vmem>>, %arg5: memref<16x128xf32, #tpu.memory_space<vmem>>, %arg6: memref<8x128xf32, #tpu.memory_space<vmem>>, %arg7: memref<8x128xf32, #tpu.memory_space<vmem>>) attributes {dimension_semantics = [#tpu.dimension_semantics<arbitrary>, #tpu.dimension_semantics<arbitrary>], iteration_bounds = array<i64: 1, 1>, scalar_prefetch = 0 : i64, scratch_operands = 1 : i64, tpu.core_type = #tpu.core_type<tc>, window_params = [{transform_indices = @transform_0, window_bounds = array<i64: 16, 128>}, {transform_indices = @transform_1, window_bounds = array<i64: 16, 128>}, {transform_indices = @transform_2, window_bounds = array<i64: 16, 128>}, {transform_indices = @transform_3, window_bounds = array<i64: 16, 128>}, {transform_indices = @transform_4, window_bounds = array<i64: 8, 128>}]} {
    %c0_i32 = arith.constant 0 : i32
    %0 = arith.cmpi eq, %arg1, %c0_i32 : i32
    %1 = arith.extui %0 : i1 to i32
    %c0_i32_0 = arith.constant 0 : i32
    %2 = arith.cmpi ne, %1, %c0_i32_0 : i32
    scf.if %2 {
      %cst_16 = arith.constant 0.000000e+00 : f32
      %27 = vector.broadcast %cst_16 : f32 to vector<8x128xf32>
      %c0_17 = arith.constant 0 : index
      %c0_18 = arith.constant 0 : index
      %28 = vector.load %arg7[%c0_17, %c0_18] : memref<8x128xf32, #tpu.memory_space<vmem>>, vector<8x128xf32>
      tpu.vector_store %arg7[%c0_17, %c0_18], %27 {strides = array<i32>} : memref<8x128xf32, #tpu.memory_space<vmem>>, vector<8x128xf32>,
    } else {
    }
    %c0 = arith.constant 0 : index
    %c0_1 = arith.constant 0 : index
    %3 = vector.load %arg2[%c0, %c0_1] : memref<16x128xf32, #tpu.memory_space<vmem>>, vector<16x128xf32>
    %c0_2 = arith.constant 0 : index
    %c0_3 = arith.constant 0 : index
    %4 = vector.load %arg3[%c0_2, %c0_3] : memref<16x128xf32, #tpu.memory_space<vmem>>, vector<16x128xf32>
    %c0_4 = arith.constant 0 : index
    %c0_5 = arith.constant 0 : index
    %5 = vector.load %arg4[%c0_4, %c0_5] : memref<16x128xf32, #tpu.memory_space<vmem>>, vector<16x128xf32>
    %c0_6 = arith.constant 0 : index
    %c0_7 = arith.constant 0 : index
    %6 = vector.load %arg5[%c0_6, %c0_7] : memref<16x128xf32, #tpu.memory_space<vmem>>, vector<16x128xf32>
    %cst = arith.constant 1.000000e+00 : f32
    %7 = vector.broadcast %cst : f32 to vector<16x128xf32>
    %8 = arith.divf %7, %6 : vector<16x128xf32>
    %9 = arith.mulf %4, %8 : vector<16x128xf32>
    %10 = arith.subf %3, %5 : vector<16x128xf32>
    %11 = arith.mulf %10, %8 : vector<16x128xf32>
    %12 = arith.mulf %9, %9 : vector<16x128xf32>
    %13 = arith.mulf %11, %11 : vector<16x128xf32>
    %14 = arith.addf %12, %13 : vector<16x128xf32>
    %15 = math.log %9 : vector<16x128xf32>
    %cst_8 = arith.constant 2.000000e+00 : f32
    %16 = vector.broadcast %cst_8 : f32 to vector<16x128xf32>
    %17 = arith.mulf %16, %15 : vector<16x128xf32>
    %18 = arith.subf %14, %17 : vector<16x128xf32>
    %c0_9 = arith.constant 0 : index
    %c0_10 = arith.constant 0 : index
    %19 = vector.load %arg7[%c0_9, %c0_10] : memref<8x128xf32, #tpu.memory_space<vmem>>, vector<8x128xf32>
    %20 = vector.shape_cast %18 : vector<16x128xf32> to vector<2x8x128xf32>
    %cst_11 = arith.constant dense<0.000000e+00> : vector<8x128xf32>
    %21 = vector.multi_reduction <add>, %20, %cst_11 [0] : vector<2x8x128xf32> to vector<8x128xf32>
    %22 = arith.addf %19, %21 : vector<8x128xf32>
    %c0_12 = arith.constant 0 : index
    %c0_13 = arith.constant 0 : index
    %23 = vector.load %arg7[%c0_12, %c0_13] : memref<8x128xf32, #tpu.memory_space<vmem>>, vector<8x128xf32>
    tpu.vector_store %arg7[%c0_12, %c0_13], %22 {strides = array<i32>} : memref<8x128xf32, #tpu.memory_space<vmem>>, vector<8x128xf32>,
    %c0_i32_14 = arith.constant 0 : i32
    %24 = arith.cmpi eq, %arg1, %c0_i32_14 : i32
    %25 = arith.extui %24 : i1 to i32
    %c0_i32_15 = arith.constant 0 : i32
    %26 = arith.cmpi ne, %25, %c0_i32_15 : i32
    scf.if %26 {
      %c0_16 = arith.constant 0 : index
      %c0_17 = arith.constant 0 : index
      %27 = vector.load %arg7[%c0_16, %c0_17] : memref<8x128xf32, #tpu.memory_space<vmem>>, vector<8x128xf32>
      %c0_18 = arith.constant 0 : index
      %c0_19 = arith.constant 0 : index
      %28 = vector.load %arg6[%c0_18, %c0_19] : memref<8x128xf32, #tpu.memory_space<vmem>>, vector<8x128xf32>
      tpu.vector_store %arg6[%c0_18, %c0_19], %27 {strides = array<i32>} : memref<8x128xf32, #tpu.memory_space<vmem>>, vector<8x128xf32>,
    } else {
    }
    return
  }
  func.func @transform_0(%arg0: i32, %arg1: i32) -> (i32, i32) {
    %c1_i32 = arith.constant 1 : i32
    %0 = arith.muli %arg0, %c1_i32 : i32
    %1 = arith.addi %0, %arg1 : i32
    %c0_i32 = arith.constant 0 : i32
    %c0_i32_0 = arith.constant 0 : i32
    return %1, %c0_i32 : i32, i32
  }
  func.func @transform_1(%arg0: i32, %arg1: i32) -> (i32, i32) {
    %c1_i32 = arith.constant 1 : i32
    %0 = arith.muli %arg0, %c1_i32 : i32
    %1 = arith.addi %0, %arg1 : i32
    %c0_i32 = arith.constant 0 : i32
    %c0_i32_0 = arith.constant 0 : i32
    return %1, %c0_i32 : i32, i32
  }
  func.func @transform_2(%arg0: i32, %arg1: i32) -> (i32, i32) {
    %c1_i32 = arith.constant 1 : i32
    %0 = arith.muli %arg0, %c1_i32 : i32
    %1 = arith.addi %0, %arg1 : i32
    %c0_i32 = arith.constant 0 : i32
    %c0_i32_0 = arith.constant 0 : i32
    return %1, %c0_i32 : i32, i32
  }
  func.func @transform_3(%arg0: i32, %arg1: i32) -> (i32, i32) {
    %c1_i32 = arith.constant 1 : i32
    %0 = arith.muli %arg0, %c1_i32 : i32
    %1 = arith.addi %0, %arg1 : i32
    %c0_i32 = arith.constant 0 : i32
    %c0_i32_0 = arith.constant 0 : i32
    return %1, %c0_i32 : i32, i32
  }
  func.func @transform_4(%arg0: i32, %arg1: i32) -> (i32, i32) {
    %c0_i32 = arith.constant 0 : i32
    %c0_i32_0 = arith.constant 0 : i32
    return %arg0, %c0_i32 : i32, i32
  }
}

</mosaic_0001>

<llo_original>
// kernel: tpu_custom_call.1
$region0: #{tpu_custom_call.1}
  #allocation0 [shape = 'u32[]', space=smem, size = 0x4, offset = 0x4, fixed_abs, tag = 'smem constant byte address 0x4 - core index']
  #allocation1 [shape = 'u32[144,128]{1,0:T(1,128)}', space=vmem, size = 0x12000, scoped, tag = 'internal scratch']
  #allocation2 [shape = 'f32[8,128]{1,0:T(8,128)}', space=vmem, size = 0x1000, scoped, tag = 'scratch operand']
  %s0 = inlined_call_operand.hbm [shape: f32[16,128], index: 0, kind: input, shape index: {}]
  %s1 = inlined_call_operand.hbm [shape: f32[16,128], index: 1, kind: input, shape index: {}]
  %s2 = inlined_call_operand.hbm [shape: f32[16,128], index: 2, kind: input, shape index: {}]
  %s3 = inlined_call_operand.hbm [shape: f32[16,128], index: 3, kind: input, shape index: {}]
  %s4 = inlined_call_operand.hbm [shape: f32[8,128], index: 4, kind: output, shape index: {}]
  %s5 = sld [smem:[#allocation0]]
  $region50: #{tpu_custom_call.1} parent=0
    _
  %s7 = ssub.s32 1, %s5
  %s8 = scalar_select 0, %s7, %s5
  $region1: #{tpu_custom_call.1} parent=0
    #allocation3 [shape = 'u8[8192]{0}', space=vmem, size = 0x2000, scoped, tag = 'input window, operand 0, single buffered']
    #allocation4 [shape = 's32[1]{0}', space=sflag, size = 0x4, scoped, tag = 'scoped memory for tpu_custom_call.1']
    #allocation5 [shape = 's32[1]{0}', space=sflag, size = 0x4, scoped, tag = 'scoped memory for tpu_custom_call.1']
    #allocation6 [shape = 'u8[8192]{0}', space=vmem, size = 0x2000, scoped, tag = 'input window, operand 1, single buffered']
    #allocation7 [shape = 's32[1]{0}', space=sflag, size = 0x4, scoped, tag = 'scoped memory for tpu_custom_call.1']
    #allocation8 [shape = 'u8[8192]{0}', space=vmem, size = 0x2000, scoped, tag = 'input window, operand 2, single buffered']
    #allocation9 [shape = 'u8[8192]{0}', space=vmem, size = 0x2000, scoped, tag = 'input window, operand 3, single buffered']
    #allocation10 [shape = 's32[1]{0}', space=sflag, size = 0x4, scoped, tag = 'scoped memory for tpu_custom_call.1']
    #allocation11 [shape = 'u8[4096]{0}', space=vmem, size = 0x1000, scoped, tag = 'output window, operand 0, single buffered']
    %9 = vsyncpa [#allocation4], 0
    %10 = vsyncpa [#allocation7], 0
    %11 = vsyncpa [#allocation10], 0
    %12 = vsyncpa [#allocation5], 0
    // Predicated region
    $region2: #{tpu_custom_call.1} parent=1 // pred_check
      _
    $region3: #{tpu_custom_call.1} parent=1 // pred_check_branch
      %14 = sbr.rel (0) target = $region5
    $region4: #{tpu_custom_call.1} parent=1 // pred_region
      %s15 = sadd.s32 0, 0
      %s16 = smul.u32 2, %s15
      %s18 = ssub.s32 256, 256
      %19 = vsyncadd [#allocation4], %s18
      %s20 = smul.addr %s16, 128
      %s21 = scalar_lea.hbm %s0, %s20
      %s22 = sshll.u32 [#allocation3], 4
      %s23 = int_to_ptr.vmem [resolvable:$true] %s22
      %28 = dma.hbm_to_vmem [thread:$0]  %s21, 256, %s23, [#allocation4], 128, 128, 8
    $region5: #{tpu_custom_call.1} parent=1 // pred_fallthru
      _
    // Predicated region
    $region6: #{tpu_custom_call.1} parent=1 // pred_check
      _
    $region7: #{tpu_custom_call.1} parent=1 // pred_check_branch
      %30 = sbr.rel (0) target = $region9
    $region8: #{tpu_custom_call.1} parent=1 // pred_region
      %s31 = sadd.s32 0, 0
      %s32 = smul.u32 2, %s31
      %s34 = ssub.s32 256, 256
      %35 = vsyncadd [#allocation7], %s34
      %s36 = smul.addr %s32, 128
      %s37 = scalar_lea.hbm %s1, %s36
      %s38 = sshll.u32 [#allocation6], 4
      %s39 = int_to_ptr.vmem [resolvable:$true] %s38
      %44 = dma.hbm_to_vmem [thread:$0]  %s37, 256, %s39, [#allocation7], 128, 128, 8
    $region9: #{tpu_custom_call.1} parent=1 // pred_fallthru
      _
    // Predicated region
    $region10: #{tpu_custom_call.1} parent=1 // pred_check
      _
    $region11: #{tpu_custom_call.1} parent=1 // pred_check_branch
      %46 = sbr.rel (0) target = $region13
    $region12: #{tpu_custom_call.1} parent=1 // pred_region
      %s47 = sadd.s32 0, 0
      %s48 = smul.u32 2, %s47
      %s50 = ssub.s32 256, 256
      %51 = vsyncadd [#allocation7], %s50
      %s52 = smul.addr %s48, 128
      %s53 = scalar_lea.hbm %s2, %s52
      %s54 = sshll.u32 [#allocation8], 4
      %s55 = int_to_ptr.vmem [resolvable:$true] %s54
      %60 = dma.hbm_to_vmem [thread:$0]  %s53, 256, %s55, [#allocation7], 128, 128, 8
    $region13: #{tpu_custom_call.1} parent=1 // pred_fallthru
      _
    // Predicated region
    $region14: #{tpu_custom_call.1} parent=1 // pred_check
      _
    $region15: #{tpu_custom_call.1} parent=1 // pred_check_branch
      %62 = sbr.rel (0) target = $region17
    $region16: #{tpu_custom_call.1} parent=1 // pred_region
      %s63 = sadd.s32 0, 0
      %s64 = smul.u32 2, %s63
      %s66 = ssub.s32 256, 256
      %67 = vsyncadd [#allocation10], %s66
      %s68 = smul.addr %s64, 128
      %s69 = scalar_lea.hbm %s3, %s68
      %s70 = sshll.u32 [#allocation9], 4
      %s71 = int_to_ptr.vmem [resolvable:$true] %s70
      %76 = dma.hbm_to_vmem [thread:$0]  %s69, 256, %s71, [#allocation10], 128, 128, 8
    $region17: #{tpu_custom_call.1} parent=1 // pred_fallthru
      _
    // Predicated region
    $region18: #{tpu_custom_call.1} parent=1 // pred_check
      _
    $region19: #{tpu_custom_call.1} parent=1 // pred_check_branch
      %78 = sbr.rel (0) target = $region21
    $region20: #{tpu_custom_call.1} parent=1 // pred_region
      %79 = dma.done [#allocation4], 256
    $region21: #{tpu_custom_call.1} parent=1 // pred_fallthru
      _
    // Predicated region
    $region22: #{tpu_custom_call.1} parent=1 // pred_check
      _
    $region23: #{tpu_custom_call.1} parent=1 // pred_check_branch
      %81 = sbr.rel (0) target = $region25
    $region24: #{tpu_custom_call.1} parent=1 // pred_region
      %82 = dma.done [#allocation7], 256
    $region25: #{tpu_custom_call.1} parent=1 // pred_fallthru
      _
    // Predicated region
    $region26: #{tpu_custom_call.1} parent=1 // pred_check
      _
    $region27: #{tpu_custom_call.1} parent=1 // pred_check_branch
      %84 = sbr.rel (0) target = $region29
    $region28: #{tpu_custom_call.1} parent=1 // pred_region
      %85 = dma.done [#allocation7], 256
    $region29: #{tpu_custom_call.1} parent=1 // pred_fallthru
      _
    // Predicated region
    $region30: #{tpu_custom_call.1} parent=1 // pred_check
      _
    $region31: #{tpu_custom_call.1} parent=1 // pred_check_branch
      %87 = sbr.rel (0) target = $region33
    $region32: #{tpu_custom_call.1} parent=1 // pred_region
      %88 = dma.done [#allocation10], 256
    $region33: #{tpu_custom_call.1} parent=1 // pred_fallthru
      _
    %s89 = sadd.s32 0, 0
    %s90 = smul.u32 2, %s89
    %s91 = sadd.s32 0, 0
    %s92 = smul.u32 2, %s91
    %s93 = sadd.s32 0, 0
    %s94 = smul.u32 2, %s93
    %s95 = sadd.s32 0, 0
    %s96 = smul.u32 2, %s95
    %p97 = scmp.eq.s32.totalorder 0, 0
    // Predicated region
    $region34: #{tpu_custom_call.1} parent=1 // pred_check
      %p98 = pneg %p97
    $region35: #{tpu_custom_call.1} parent=1 // pred_check_branch
      %100 = sbr.rel (%p98) target = $region37
    $region36: #{tpu_custom_call.1} parent=1 // pred_region
      %101 = vst [vmem:[#allocation2] sm:$0xff] 0.0
    $region37: #{tpu_custom_call.1} parent=1 // pred_fallthru
      _
    %v102 = vld [vmem:[#allocation3] sm:$0xff]
    %v103 = vld [vmem:[#allocation3 + $0x8] sm:$0xff]
    %v104 = vld [vmem:[#allocation6] sm:$0xff]
    %v105 = vld [vmem:[#allocation6 + $0x8] sm:$0xff]
    %v106 = vld [vmem:[#allocation8] sm:$0xff]
    %v107 = vld [vmem:[#allocation8 + $0x8] sm:$0xff]
    %v108 = vld [vmem:[#allocation9] sm:$0xff]
    %v109 = vld [vmem:[#allocation9 + $0x8] sm:$0xff]
    %v110 = vrcp.pop %v108
    %v111 = vmul.f32 1.0, %v110
    %v112 = vrcp.pop %v109
    %v113 = vmul.f32 1.0, %v112
    %v114 = vmul.f32 %v104, %v111
    %v115 = vmul.f32 %v105, %v113
    %v116 = vsub.f32 %v102, %v106
    %v117 = vsub.f32 %v103, %v107
    %v118 = vmul.f32 %v116, %v111
    %v119 = vmul.f32 %v117, %v113
    %v120 = vmul.f32 %v114, %v114
    %v121 = vmul.f32 %v115, %v115
    %v122 = vmul.f32 %v118, %v118
    %v123 = vmul.f32 %v119, %v119
    %v124 = vadd.f32 %v120, %v122
    %v125 = vadd.f32 %v121, %v123
    %v126 = vlog2.pop %v114
    %v127 = vmul.f32 %v126, 0.6931472
    %v128 = vlog2.pop %v115
    %v129 = vmul.f32 %v128, 0.6931472
    %v130 = vmul.f32 %v127, 2.0
    %v131 = vmul.f32 %v129, 2.0
    %v132 = vsub.f32 %v124, %v130
    %v133 = vsub.f32 %v125, %v131
    %v134 = vld [vmem:[#allocation2] sm:$0xff]
    %v135 = vadd.f32 %v132, %v133
    %v136 = vadd.f32 %v134, %v135
    %137 = vst [vmem:[#allocation2] sm:$0xff] %v136
    // Predicated region
    $region38: #{tpu_custom_call.1} parent=1 // pred_check
      %p138 = pneg %p97
    $region39: #{tpu_custom_call.1} parent=1 // pred_check_branch
      %140 = sbr.rel (%p138) target = $region41
    $region40: #{tpu_custom_call.1} parent=1 // pred_region
      %v141 = vld [vmem:[#allocation2] sm:$0xff]
      %142 = vst [vmem:[#allocation11] sm:$0xff] %v141
    $region41: #{tpu_custom_call.1} parent=1 // pred_fallthru
      _
    // Predicated region
    $region42: #{tpu_custom_call.1} parent=1 // pred_check
      _
    $region43: #{tpu_custom_call.1} parent=1 // pred_check_branch
      %144 = sbr.rel (0) target = $region45
    $region44: #{tpu_custom_call.1} parent=1 // pred_region
      %s146 = ssub.s32 128, 128
      %147 = vsyncadd [#allocation5], %s146
      %s149 = sshll.u32 [#allocation11], 4
      %s150 = int_to_ptr.vmem [resolvable:$true] %s149
      %152 = dma.vmem_to_hbm [thread:$0]  %s150, 128, %s4, [#allocation5]
    $region45: #{tpu_custom_call.1} parent=1 // pred_fallthru
      _
    // Predicated region
    $region46: #{tpu_custom_call.1} parent=1 // pred_check
      _
    $region47: #{tpu_custom_call.1} parent=1 // pred_check_branch
      %154 = sbr.rel (0) target = $region49
    $region48: #{tpu_custom_call.1} parent=1 // pred_region
      %155 = dma.done [#allocation5], 128
    $region49: #{tpu_custom_call.1} parent=1 // pred_fallthru
      _
    %156 = vsyncpa [#allocation4], 1
    %157 = vsyncpa [#allocation7], 1
    %158 = vsyncpa [#allocation10], 1
    %159 = vsyncpa [#allocation5], 1

</llo_original>
